<compile_context>
chip_gen: v5e
topology: v5e:2x2
jax: 0.10.0
libtpu: 0.0.40
codegen_flags: <defaults>
</compile_context>

<pallas_src>
import jax
import jax.numpy as jnp
from jax.experimental import pallas as pl
from jax.experimental.pallas import tpu as pltpu

# ---------------- model hyper-parameters (small synthetic instance) ----------------
VOCAB_SIZE = 50
EMBED_DIM = 32            # D
SEQ_LEN = 16              # L
BATCH = 2                 # B
KERNEL_SIZES = (3, 4, 5)
KS_MAX = max(KERNEL_SIZES)
KERNEL_NUM = 8            # K per branch (torch default is 200; kept small here)
LABEL_NUM = 4

# ---------------- kernel-side (padded / lane-friendly) dimensions ----------------
LOUT = SEQ_LEN - min(KERNEL_SIZES) + 1          # 14: conv positions of the narrowest filter
LOUT_PAD = 16                                   # sublane-friendly time tile
L_PAD = 24                                      # padded input length >= LOUT_PAD + KS_MAX - 1, mult of 8
CHAN = len(KERNEL_SIZES) * KERNEL_NUM           # 24: fused conv output channels (3 * K)
CHAN_PAD = 128                                  # lane-friendly channel width
LABEL_PAD = 128                                 # lane-dense output width


def cnn_text_kernel(x_ref, wc_ref, bc_ref, pmask_ref, wl_ref, bl_ref, lmask_ref, out_ref):
    B = x_ref.shape[0]
    D = x_ref.shape[2]
    T = pmask_ref.shape[0]          # LOUT_PAD
    C = wc_ref.shape[2]             # CHAN_PAD

    x = x_ref[...]                  # (B, L_PAD, D) bf16
    wc = wc_ref[...]                # (KS_MAX, D, C) bf16

    # --- fused conv: all three branch widths via 5 shifted accumulating dots (f32 accumulate).
    # Filter rows j >= ks of a branch are zero-padded in wc, so the sum reproduces each Conv2d.
    acc = jnp.zeros((B * T, C), jnp.float32)
    for j in range(KS_MAX):                                    # static unroll (5 iters)
        xj = x[:, j:j + T, :].reshape(B * T, D)
        acc = acc + jnp.dot(xj, wc[j], preferred_element_type=jnp.float32)
    conv = acc.reshape(B, T, C)
    conv = jnp.maximum(conv + bc_ref[...], 0.0)                # bias + ReLU

    # Zero time positions that are invalid for a branch width / padding row (precomputed 0/1 mask);
    # post-ReLU values are >= 0, so masking to 0 preserves the max-pool result exactly.
    conv = conv * pmask_ref[...]
    feats = jnp.max(conv, axis=1)                              # time max-pool -> (B, C)

    # TODO(synk): nn.Dropout(p=0.3) is stochastic at train time; forward here is eval-mode identity.

    # LinearLayer: y = feats @ W + b, then its default ReLU (linear_activation=None).
    y = jnp.dot(feats.astype(jnp.bfloat16), wl_ref[...],
                preferred_element_type=jnp.float32) + bl_ref[...]
    y = jnp.maximum(y, 0.0)

    # Softmax(dim=1) over the REAL label columns only: additive -1e30 mask on padded lanes.
    y = y + lmask_ref[...]
    y = y - jnp.max(y, axis=-1, keepdims=True)
    e = jnp.exp(y)
    inv = pl.reciprocal(jnp.sum(e, axis=-1, keepdims=True), approx=True)   # EUP slot
    out_ref[...] = e * inv


# ---------------- one-time parameter packing (plain JAX, OUTSIDE the per-call path) ----------------
def pack_params(params):
    """Fuse the three conv branches + linear layer into padded, lane-dense bf16 operands + masks."""
    D, K, L = EMBED_DIM, KERNEL_NUM, SEQ_LEN
    wc = jnp.zeros((KS_MAX, D, CHAN_PAD), jnp.float32)
    bc = jnp.zeros((1, CHAN_PAD), jnp.float32)
    pmask = jnp.zeros((LOUT_PAD, CHAN_PAD), jnp.float32)
    t_idx = jnp.arange(LOUT_PAD)
    for gi, ks in enumerate(KERNEL_SIZES):
        w = params[f"w{ks}"]                                       # (ks, D, K)
        wc = wc.at[:ks, :, gi * K:(gi + 1) * K].set(w)             # rows ks..5 stay zero
        bc = bc.at[:, gi * K:(gi + 1) * K].set(params[f"b{ks}"])
        valid = L - ks + 1
        col = (t_idx < valid).astype(jnp.float32)[:, None]         # (LOUT_PAD, 1)
        pmask = pmask.at[:, gi * K:(gi + 1) * K].set(jnp.broadcast_to(col, (LOUT_PAD, K)))
    wl = jnp.zeros((CHAN_PAD, LABEL_PAD), jnp.float32).at[:CHAN, :LABEL_NUM].set(params["wl"])
    bl = jnp.zeros((1, LABEL_PAD), jnp.float32).at[:, :LABEL_NUM].set(params["bl"])
    lmask = jnp.where(jnp.arange(LABEL_PAD) < LABEL_NUM, 0.0, -1e30).astype(jnp.float32)[None, :]
    return {
        "wc": wc.astype(jnp.bfloat16), "bc": bc, "pmask": pmask,
        "wl": wl.astype(jnp.bfloat16), "bl": bl, "lmask": lmask,
    }


@jax.jit
def cnn_text_forward(x_emb, packed):
    """x_emb: (B, L, D) embedded tokens. Returns softmax probabilities (B, LABEL_NUM)."""
    B = x_emb.shape[0]
    # Zero-pad the time axis so every shifted window (up to shift KS_MAX-1 at T=LOUT_PAD) is in
    # range; the invalid tail positions are zeroed by pmask inside the kernel.
    x = jnp.pad(x_emb.astype(jnp.float32),
                ((0, 0), (0, L_PAD - SEQ_LEN), (0, 0))).astype(jnp.bfloat16)

    b_tile = B   # toy size: whole batch per grid step; use a multiple-of-8 (128+) tile at scale
    out = pl.pallas_call(
        cnn_text_kernel,
        out_shape=jax.ShapeDtypeStruct((B, LABEL_PAD), jnp.float32),
        grid=(pl.cdiv(B, b_tile),),
        in_specs=[
            pl.BlockSpec((b_tile, L_PAD, EMBED_DIM), lambda i: (i, 0, 0)),   # embedded activations
            pl.BlockSpec((KS_MAX, EMBED_DIM, CHAN_PAD), lambda i: (0, 0, 0)),  # fused conv weight
            pl.BlockSpec((1, CHAN_PAD), lambda i: (0, 0)),                   # fused conv bias
            pl.BlockSpec((LOUT_PAD, CHAN_PAD), lambda i: (0, 0)),            # time/channel 0-1 mask
            pl.BlockSpec((CHAN_PAD, LABEL_PAD), lambda i: (0, 0)),           # linear weight
            pl.BlockSpec((1, LABEL_PAD), lambda i: (0, 0)),                  # linear bias
            pl.BlockSpec((1, LABEL_PAD), lambda i: (0, 0)),                  # label additive mask
        ],
        out_specs=pl.BlockSpec((b_tile, LABEL_PAD), lambda i: (i, 0)),       # lane-dense output
        compiler_params=pltpu.CompilerParams(
            dimension_semantics=("parallel",),   # batch axis: 2 TCs on v7x, neutral on v5e/v6e
        ),
    )(x, packed["wc"], packed["bc"], packed["pmask"],
      packed["wl"], packed["bl"], packed["lmask"])
    return out[:, :LABEL_NUM]


def model_forward(tokens, params, packed, labels=None):
    """Full module forward: embedding gather (glue) + Pallas hot path. Returns (logits, loss|None)."""
    x_emb = params["embedding"][tokens]                 # (B, L, D) embedding lookup in plain JAX
    logits = cnn_text_forward(x_emb, packed)
    if labels is not None:
        loss = jnp.mean((logits - labels) ** 2)         # torch.nn.MSELoss() glue
        return logits, loss
    return logits, None


# ---------------- pure-JAX reference (unfused, f32) for correctness checking ----------------
def reference_forward(tokens, params):
    x = params["embedding"][tokens].astype(jnp.float32)
    pooled = []
    for ks in KERNEL_SIZES:
        w, b = params[f"w{ks}"], params[f"b{ks}"]
        lout = SEQ_LEN - ks + 1
        acc = jnp.zeros((x.shape[0], lout, KERNEL_NUM), jnp.float32)
        for j in range(ks):
            acc = acc + jnp.einsum("bld,dk->blk", x[:, j:j + lout, :], w[j])
        acc = jnp.maximum(acc + b, 0.0)
        pooled.append(jnp.max(acc, axis=1))
    feats = jnp.concatenate(pooled, axis=1)
    y = jnp.maximum(feats @ params["wl"] + params["bl"], 0.0)
    return jax.nn.softmax(y, axis=1)


def init_params(key):
    ks = jax.random.split(key, 9)
    scale = 0.1
    return {
        "embedding": scale * jax.random.normal(ks[0], (VOCAB_SIZE, EMBED_DIM), jnp.float32),
        # Conv2d(1, K, (ks, D)) weights stored as (ks, D, K); biases as (1, K).
        "w3": scale * jax.random.normal(ks[1], (3, EMBED_DIM, KERNEL_NUM), jnp.float32),
        "b3": scale * jax.random.normal(ks[2], (1, KERNEL_NUM), jnp.float32),
        "w4": scale * jax.random.normal(ks[3], (4, EMBED_DIM, KERNEL_NUM), jnp.float32),
        "b4": scale * jax.random.normal(ks[4], (1, KERNEL_NUM), jnp.float32),
        "w5": scale * jax.random.normal(ks[5], (5, EMBED_DIM, KERNEL_NUM), jnp.float32),
        "b5": scale * jax.random.normal(ks[6], (1, KERNEL_NUM), jnp.float32),
        # nn.Linear(3*K, label_num): stored as (in, out) so y = x @ W + b.
        "wl": scale * jax.random.normal(ks[7], (len(KERNEL_SIZES) * KERNEL_NUM, LABEL_NUM), jnp.float32),
        "bl": scale * jax.random.normal(ks[8], (1, LABEL_NUM), jnp.float32),
    }


if __name__ == "__main__":
    key = jax.random.PRNGKey(0)
    pkey, tkey = jax.random.split(key)
    params = init_params(pkey)
    packed = jax.tree_util.tree_map(jax.block_until_ready, pack_params(params))  # one-time packing
    tokens = jax.random.randint(tkey, (BATCH, SEQ_LEN), 0, VOCAB_SIZE, dtype=jnp.int32)

    logits, _ = model_forward(tokens, params, packed)
    logits = jax.block_until_ready(logits)

    ref = reference_forward(tokens, params)
    assert logits.shape == (BATCH, LABEL_NUM)
    assert bool(jnp.all(jnp.isfinite(logits)))
    # bf16 matmul inputs + approx reciprocal -> loosened (but still tight for ~0.25 probs) tolerances
    assert bool(jnp.allclose(jnp.sum(logits, axis=1), 1.0, atol=1e-2))      # softmax rows sum to ~1
    assert bool(jnp.allclose(logits, ref, atol=2e-2))                       # matches unfused f32 ref
    print("KERNEL_OK")
</pallas_src>

<mosaic_0001>
module attributes {stable_mosaic.version = 11 : i64} {
  func.func @cnn_text_kernel(%arg0: i32, %arg1: memref<2x24x32xbf16, #tpu.memory_space<vmem>>, %arg2: memref<5x32x128xbf16, #tpu.memory_space<vmem>>, %arg3: memref<1x128xf32, #tpu.memory_space<vmem>>, %arg4: memref<16x128xf32, #tpu.memory_space<vmem>>, %arg5: memref<128x128xbf16, #tpu.memory_space<vmem>>, %arg6: memref<1x128xf32, #tpu.memory_space<vmem>>, %arg7: memref<1x128xf32, #tpu.memory_space<vmem>>, %arg8: memref<2x128xf32, #tpu.memory_space<vmem>>) attributes {dimension_semantics = [#tpu.dimension_semantics<parallel>], iteration_bounds = array<i64: 1>, scalar_prefetch = 0 : i64, scratch_operands = 0 : i64, tpu.core_type = #tpu.core_type<tc>, window_params = [{transform_indices = @transform_0, window_bounds = array<i64: 2, 24, 32>}, {pipeline_mode = #tpu.pipeline_mode<synchronous>, transform_indices = @transform_1, window_bounds = array<i64: 5, 32, 128>}, {pipeline_mode = #tpu.pipeline_mode<synchronous>, transform_indices = @transform_2, window_bounds = array<i64: 1, 128>}, {pipeline_mode = #tpu.pipeline_mode<synchronous>, transform_indices = @transform_3, window_bounds = array<i64: 16, 128>}, {pipeline_mode = #tpu.pipeline_mode<synchronous>, transform_indices = @transform_4, window_bounds = array<i64: 128, 128>}, {pipeline_mode = #tpu.pipeline_mode<synchronous>, transform_indices = @transform_5, window_bounds = array<i64: 1, 128>}, {pipeline_mode = #tpu.pipeline_mode<synchronous>, transform_indices = @transform_6, window_bounds = array<i64: 1, 128>}, {transform_indices = @transform_7, window_bounds = array<i64: 2, 128>}]} {
    %c0 = arith.constant 0 : index
    %c0_0 = arith.constant 0 : index
    %c0_1 = arith.constant 0 : index
    %0 = vector.load %arg1[%c0, %c0_0, %c0_1] : memref<2x24x32xbf16, #tpu.memory_space<vmem>>, vector<2x24x32xbf16>
    %c0_2 = arith.constant 0 : index
    %c0_3 = arith.constant 0 : index
    %c0_4 = arith.constant 0 : index
    %1 = vector.load %arg2[%c0_2, %c0_3, %c0_4] : memref<5x32x128xbf16, #tpu.memory_space<vmem>>, vector<5x32x128xbf16>
    %cst = arith.constant 0.000000e+00 : f32
    %2 = vector.broadcast %cst : f32 to vector<32x128xf32>
    %3 = vector.extract_strided_slice %0 {offsets = [0, 0, 0], sizes = [2, 16, 32], strides = [1, 1, 1]} : vector<2x24x32xbf16> to vector<2x16x32xbf16>
    %4 = vector.shape_cast %3 : vector<2x16x32xbf16> to vector<32x32xbf16>
    %5 = vector.extract_strided_slice %1 {offsets = [0, 0, 0], sizes = [1, 32, 128], strides = [1, 1, 1]} : vector<5x32x128xbf16> to vector<1x32x128xbf16>
    %6 = vector.shape_cast %5 : vector<1x32x128xbf16> to vector<32x128xbf16>
    %cst_5 = arith.constant dense<0.000000e+00> : vector<32x128xf32>
    %7 = tpu.matmul %4, %6, %cst_5 {dimension_numbers = #tpu.dot_dimension_numbers<[1], [0], [0], [1], [0, 0, 1, 1], [], []>} : vector<32x32xbf16>, vector<32x128xbf16>, vector<32x128xf32> -> vector<32x128xf32>
    %8 = arith.addf %2, %7 : vector<32x128xf32>
    %9 = vector.extract_strided_slice %0 {offsets = [0, 1, 0], sizes = [2, 16, 32], strides = [1, 1, 1]} : vector<2x24x32xbf16> to vector<2x16x32xbf16>
    %10 = vector.shape_cast %9 : vector<2x16x32xbf16> to vector<32x32xbf16>
    %11 = vector.extract_strided_slice %1 {offsets = [1, 0, 0], sizes = [1, 32, 128], strides = [1, 1, 1]} : vector<5x32x128xbf16> to vector<1x32x128xbf16>
    %12 = vector.shape_cast %11 : vector<1x32x128xbf16> to vector<32x128xbf16>
    %cst_6 = arith.constant dense<0.000000e+00> : vector<32x128xf32>
    %13 = tpu.matmul %10, %12, %cst_6 {dimension_numbers = #tpu.dot_dimension_numbers<[1], [0], [0], [1], [0, 0, 1, 1], [], []>} : vector<32x32xbf16>, vector<32x128xbf16>, vector<32x128xf32> -> vector<32x128xf32>
    %14 = arith.addf %8, %13 : vector<32x128xf32>
    %15 = vector.extract_strided_slice %0 {offsets = [0, 2, 0], sizes = [2, 16, 32], strides = [1, 1, 1]} : vector<2x24x32xbf16> to vector<2x16x32xbf16>
    %16 = vector.shape_cast %15 : vector<2x16x32xbf16> to vector<32x32xbf16>
    %17 = vector.extract_strided_slice %1 {offsets = [2, 0, 0], sizes = [1, 32, 128], strides = [1, 1, 1]} : vector<5x32x128xbf16> to vector<1x32x128xbf16>
    %18 = vector.shape_cast %17 : vector<1x32x128xbf16> to vector<32x128xbf16>
    %cst_7 = arith.constant dense<0.000000e+00> : vector<32x128xf32>
    %19 = tpu.matmul %16, %18, %cst_7 {dimension_numbers = #tpu.dot_dimension_numbers<[1], [0], [0], [1], [0, 0, 1, 1], [], []>} : vector<32x32xbf16>, vector<32x128xbf16>, vector<32x128xf32> -> vector<32x128xf32>
    %20 = arith.addf %14, %19 : vector<32x128xf32>
    %21 = vector.extract_strided_slice %0 {offsets = [0, 3, 0], sizes = [2, 16, 32], strides = [1, 1, 1]} : vector<2x24x32xbf16> to vector<2x16x32xbf16>
    %22 = vector.shape_cast %21 : vector<2x16x32xbf16> to vector<32x32xbf16>
    %23 = vector.extract_strided_slice %1 {offsets = [3, 0, 0], sizes = [1, 32, 128], strides = [1, 1, 1]} : vector<5x32x128xbf16> to vector<1x32x128xbf16>
    %24 = vector.shape_cast %23 : vector<1x32x128xbf16> to vector<32x128xbf16>
    %cst_8 = arith.constant dense<0.000000e+00> : vector<32x128xf32>
    %25 = tpu.matmul %22, %24, %cst_8 {dimension_numbers = #tpu.dot_dimension_numbers<[1], [0], [0], [1], [0, 0, 1, 1], [], []>} : vector<32x32xbf16>, vector<32x128xbf16>, vector<32x128xf32> -> vector<32x128xf32>
    %26 = arith.addf %20, %25 : vector<32x128xf32>
    %27 = vector.extract_strided_slice %0 {offsets = [0, 4, 0], sizes = [2, 16, 32], strides = [1, 1, 1]} : vector<2x24x32xbf16> to vector<2x16x32xbf16>
    %28 = vector.shape_cast %27 : vector<2x16x32xbf16> to vector<32x32xbf16>
    %29 = vector.extract_strided_slice %1 {offsets = [4, 0, 0], sizes = [1, 32, 128], strides = [1, 1, 1]} : vector<5x32x128xbf16> to vector<1x32x128xbf16>
    %30 = vector.shape_cast %29 : vector<1x32x128xbf16> to vector<32x128xbf16>
    %cst_9 = arith.constant dense<0.000000e+00> : vector<32x128xf32>
    %31 = tpu.matmul %28, %30, %cst_9 {dimension_numbers = #tpu.dot_dimension_numbers<[1], [0], [0], [1], [0, 0, 1, 1], [], []>} : vector<32x32xbf16>, vector<32x128xbf16>, vector<32x128xf32> -> vector<32x128xf32>
    %32 = arith.addf %26, %31 : vector<32x128xf32>
    %33 = vector.shape_cast %32 : vector<32x128xf32> to vector<2x16x128xf32>
    %c0_10 = arith.constant 0 : index
    %c0_11 = arith.constant 0 : index
    %34 = vector.load %arg3[%c0_10, %c0_11] : memref<1x128xf32, #tpu.memory_space<vmem>>, vector<1x128xf32>
    %35 = vector.shape_cast %34 : vector<1x128xf32> to vector<1x1x128xf32>
    %36 = vector.broadcast %35 : vector<1x1x128xf32> to vector<2x16x128xf32>
    %37 = arith.addf %33, %36 : vector<2x16x128xf32>
    %cst_12 = arith.constant 0.000000e+00 : f32
    %38 = vector.broadcast %cst_12 : f32 to vector<2x16x128xf32>
    %39 = arith.maximumf %37, %38 : vector<2x16x128xf32>
    %c0_13 = arith.constant 0 : index
    %c0_14 = arith.constant 0 : index
    %40 = vector.load %arg4[%c0_13, %c0_14] : memref<16x128xf32, #tpu.memory_space<vmem>>, vector<16x128xf32>
    %41 = vector.shape_cast %40 : vector<16x128xf32> to vector<1x16x128xf32>
    %42 = vector.broadcast %41 : vector<1x16x128xf32> to vector<2x16x128xf32>
    %43 = arith.mulf %39, %42 : vector<2x16x128xf32>
    %cst_15 = arith.constant dense<0xFF800000> : vector<2x128xf32>
    %44 = vector.multi_reduction <maximumf>, %43, %cst_15 [1] : vector<2x16x128xf32> to vector<2x128xf32>
    %45 = arith.truncf %44 : vector<2x128xf32> to vector<2x128xbf16>
    %c0_16 = arith.constant 0 : index
    %c0_17 = arith.constant 0 : index
    %46 = vector.load %arg5[%c0_16, %c0_17] : memref<128x128xbf16, #tpu.memory_space<vmem>>, vector<128x128xbf16>
    %cst_18 = arith.constant dense<0.000000e+00> : vector<2x128xf32>
    %47 = tpu.matmul %45, %46, %cst_18 {dimension_numbers = #tpu.dot_dimension_numbers<[1], [0], [0], [1], [0, 0, 1, 1], [], []>} : vector<2x128xbf16>, vector<128x128xbf16>, vector<2x128xf32> -> vector<2x128xf32>
    %c0_19 = arith.constant 0 : index
    %c0_20 = arith.constant 0 : index
    %48 = vector.load %arg6[%c0_19, %c0_20] : memref<1x128xf32, #tpu.memory_space<vmem>>, vector<1x128xf32>
    %49 = vector.broadcast %48 : vector<1x128xf32> to vector<2x128xf32>
    %50 = arith.addf %47, %49 : vector<2x128xf32>
    %cst_21 = arith.constant 0.000000e+00 : f32
    %51 = vector.broadcast %cst_21 : f32 to vector<2x128xf32>
    %52 = arith.maximumf %50, %51 : vector<2x128xf32>
    %c0_22 = arith.constant 0 : index
    %c0_23 = arith.constant 0 : index
    %53 = vector.load %arg7[%c0_22, %c0_23] : memref<1x128xf32, #tpu.memory_space<vmem>>, vector<1x128xf32>
    %54 = vector.broadcast %53 : vector<1x128xf32> to vector<2x128xf32>
    %55 = arith.addf %52, %54 : vector<2x128xf32>
    %cst_24 = arith.constant dense<0xFF800000> : vector<2xf32>
    %56 = vector.multi_reduction <maximumf>, %55, %cst_24 [1] : vector<2x128xf32> to vector<2xf32>
    %57 = vector.shape_cast %56 : vector<2xf32> to vector<2x1xf32>
    %58 = vector.broadcast %57 : vector<2x1xf32> to vector<2x128xf32>
    %59 = arith.subf %55, %58 : vector<2x128xf32>
    %60 = math.exp %59 : vector<2x128xf32>
    %cst_25 = arith.constant dense<0.000000e+00> : vector<2xf32>
    %61 = vector.multi_reduction <add>, %60, %cst_25 [1] : vector<2x128xf32> to vector<2xf32>
    %62 = vector.shape_cast %61 : vector<2xf32> to vector<2x1xf32>
    %63 = tpu.reciprocal %62 {approx = true} : vector<2x1xf32> -> vector<2x1xf32>
    %64 = vector.broadcast %63 : vector<2x1xf32> to vector<2x128xf32>
    %65 = arith.mulf %60, %64 : vector<2x128xf32>
    %c0_26 = arith.constant 0 : index
    %c0_27 = arith.constant 0 : index
    %66 = vector.load %arg8[%c0_26, %c0_27] : memref<2x128xf32, #tpu.memory_space<vmem>>, vector<2x128xf32>
    tpu.vector_store %arg8[%c0_26, %c0_27], %65 {strides = array<i32>} : memref<2x128xf32, #tpu.memory_space<vmem>>, vector<2x128xf32>,
    return
  }
  func.func @transform_0(%arg0: i32) -> (i32, i32, i32) {
    %c0_i32 = arith.constant 0 : i32
    %c0_i32_0 = arith.constant 0 : i32
    %c0_i32_1 = arith.constant 0 : i32
    return %arg0, %c0_i32, %c0_i32_0 : i32, i32, i32
  }
  func.func @transform_1(%arg0: i32) -> (i32, i32, i32) {
    %c0_i32 = arith.constant 0 : i32
    %c0_i32_0 = arith.constant 0 : i32
    %c0_i32_1 = arith.constant 0 : i32
    %c0_i32_2 = arith.constant 0 : i32
    return %c0_i32, %c0_i32_0, %c0_i32_1 : i32, i32, i32
  }
  func.func @transform_2(%arg0: i32) -> (i32, i32) {
    %c0_i32 = arith.constant 0 : i32
    %c0_i32_0 = arith.constant 0 : i32
    %c0_i32_1 = arith.constant 0 : i32
    return %c0_i32, %c0_i32_0 : i32, i32
  }
  func.func @transform_3(%arg0: i32) -> (i32, i32) {
    %c0_i32 = arith.constant 0 : i32
    %c0_i32_0 = arith.constant 0 : i32
    %c0_i32_1 = arith.constant 0 : i32
    return %c0_i32, %c0_i32_0 : i32, i32
  }
  func.func @transform_4(%arg0: i32) -> (i32, i32) {
    %c0_i32 = arith.constant 0 : i32
    %c0_i32_0 = arith.constant 0 : i32
    %c0_i32_1 = arith.constant 0 : i32
    return %c0_i32, %c0_i32_0 : i32, i32
  }
  func.func @transform_5(%arg0: i32) -> (i32, i32) {
    %c0_i32 = arith.constant 0 : i32
    %c0_i32_0 = arith.constant 0 : i32
    %c0_i32_1 = arith.constant 0 : i32
    return %c0_i32, %c0_i32_0 : i32, i32
  }
  func.func @transform_6(%arg0: i32) -> (i32, i32) {
    %c0_i32 = arith.constant 0 : i32
    %c0_i32_0 = arith.constant 0 : i32
    %c0_i32_1 = arith.constant 0 : i32
    return %c0_i32, %c0_i32_0 : i32, i32
  }
  func.func @transform_7(%arg0: i32) -> (i32, i32) {
    %c0_i32 = arith.constant 0 : i32
    %c0_i32_0 = arith.constant 0 : i32
    return %arg0, %c0_i32 : i32, i32
  }
}

</mosaic_0001>

<llo_original>
// kernel: cnn_text_forward.1
$region0: #{cnn_text_forward.1}
  #allocation0 [shape = 'u32[]', space=smem, size = 0x4, offset = 0x4, fixed_abs, tag = 'smem constant byte address 0x4 - core index']
  #allocation1 [shape = 'u32[72,128]{1,0:T(1,128)}', space=vmem, size = 0x9000, scoped, tag = 'internal scratch']
  %s0 = inlined_call_operand.vmem [shape: bf16[2,24,32], index: 0, kind: input, shape index: {}]
  %s1 = inlined_call_operand.vmem [shape: bf16[5,32,128], index: 1, kind: input, shape index: {}]
  %s2 = inlined_call_operand.vmem [shape: f32[1,128], index: 2, kind: input, shape index: {}]
  %s3 = inlined_call_operand.hbm [shape: f32[16,128], index: 3, kind: input, shape index: {}]
  %s4 = inlined_call_operand.hbm [shape: bf16[128,128], index: 4, kind: input, shape index: {}]
  %s5 = inlined_call_operand.vmem [shape: f32[1,128], index: 5, kind: input, shape index: {}]
  %s6 = inlined_call_operand.vmem [shape: f32[1,128], index: 6, kind: input, shape index: {}]
  %s7 = inlined_call_operand.hbm [shape: f32[2,128], index: 7, kind: output, shape index: {}]
  %s8 = sld [smem:[#allocation0]]
  $region46: #{cnn_text_forward.1} parent=0
    _
  %s10 = ssub.s32 1, %s8
  %s11 = scalar_select 0, %s10, %s8
  $region1: #{cnn_text_forward.1} parent=0
    #allocation2 [shape = 'u8[8192]{0}', space=vmem, size = 0x2000, scoped, tag = 'input window, operand 3, single buffered']
    #allocation3 [shape = 's32[1]{0}', space=sflag, size = 0x4, scoped, tag = 'scoped memory for cnn_text_forward.1']
    #allocation4 [shape = 's32[1]{0}', space=sflag, size = 0x4, scoped, tag = 'scoped memory for cnn_text_forward.1']
    #allocation5 [shape = 'u8[32768]{0}', space=vmem, size = 0x8000, scoped, tag = 'input window, operand 4, single buffered']
    #allocation6 [shape = 's32[1]{0}', space=sflag, size = 0x4, scoped, tag = 'scoped memory for cnn_text_forward.1']
    #allocation7 [shape = 'u8[1024]{0}', space=vmem, size = 0x400, scoped, tag = 'output window, operand 0, single buffered']
    %12 = vsyncpa [#allocation3], 0
    %13 = vsyncpa [#allocation6], 0
    %14 = vsyncpa [#allocation4], 0
    // Predicated region
    $region2: #{cnn_text_forward.1} parent=1 // pred_check
      _
    $region3: #{cnn_text_forward.1} parent=1 // pred_check_branch
      %16 = sbr.rel (0) target = $region5
    $region4: #{cnn_text_forward.1} parent=1 // pred_region
      _
    $region5: #{cnn_text_forward.1} parent=1 // pred_fallthru
      _
    // Predicated region
    $region6: #{cnn_text_forward.1} parent=1 // pred_check
      _
    $region7: #{cnn_text_forward.1} parent=1 // pred_check_branch
      %18 = sbr.rel (0) target = $region9
    $region8: #{cnn_text_forward.1} parent=1 // pred_region
      _
    $region9: #{cnn_text_forward.1} parent=1 // pred_fallthru
      _
    // Predicated region
    $region10: #{cnn_text_forward.1} parent=1 // pred_check
      _
    $region11: #{cnn_text_forward.1} parent=1 // pred_check_branch
      %20 = sbr.rel (0) target = $region13
    $region12: #{cnn_text_forward.1} parent=1 // pred_region
      _
    $region13: #{cnn_text_forward.1} parent=1 // pred_fallthru
      _
    // Predicated region
    $region14: #{cnn_text_forward.1} parent=1 // pred_check
      _
    $region15: #{cnn_text_forward.1} parent=1 // pred_check_branch
      %22 = sbr.rel (0) target = $region17
    $region16: #{cnn_text_forward.1} parent=1 // pred_region
      %24 = vsyncadd [#allocation3], 0
      %s25 = sshll.u32 %s3, 4
      %s26 = int_to_ptr.hbm [resolvable:$true] %s25
      %s27 = sshll.u32 [#allocation2], 4
      %s28 = int_to_ptr.vmem [resolvable:$true] %s27
      %33 = dma.hbm_to_vmem [thread:$0]  %s26, 256, %s28, [#allocation3], 128, 128, 8
    $region17: #{cnn_text_forward.1} parent=1 // pred_fallthru
      _
    // Predicated region
    $region18: #{cnn_text_forward.1} parent=1 // pred_check
      _
    $region19: #{cnn_text_forward.1} parent=1 // pred_check_branch
      %35 = sbr.rel (0) target = $region21
    $region20: #{cnn_text_forward.1} parent=1 // pred_region
      %37 = vsyncadd [#allocation6], 0
      %s38 = sshll.u32 %s4, 4
      %s39 = int_to_ptr.hbm [resolvable:$true] %s38
      %s40 = sshll.u32 [#allocation5], 4
      %s41 = int_to_ptr.vmem [resolvable:$true] %s40
      %46 = dma.hbm_to_vmem [thread:$0]  %s39, 1024, %s41, [#allocation6], 64, 64, 4
    $region21: #{cnn_text_forward.1} parent=1 // pred_fallthru
      _
    // Predicated region
    $region22: #{cnn_text_forward.1} parent=1 // pred_check
      _
    $region23: #{cnn_text_forward.1} parent=1 // pred_check_branch
      %48 = sbr.rel (0) target = $region25
    $region24: #{cnn_text_forward.1} parent=1 // pred_region
      _
    $region25: #{cnn_text_forward.1} parent=1 // pred_fallthru
      _
    // Predicated region
    $region26: #{cnn_text_forward.1} parent=1 // pred_check
      _
    $region27: #{cnn_text_forward.1} parent=1 // pred_check_branch
      %50 = sbr.rel (0) target = $region29
    $region28: #{cnn_text_forward.1} parent=1 // pred_region
      _
    $region29: #{cnn_text_forward.1} parent=1 // pred_fallthru
      _
    // Predicated region
    $region30: #{cnn_text_forward.1} parent=1 // pred_check
      _
    $region31: #{cnn_text_forward.1} parent=1 // pred_check_branch
      %52 = sbr.rel (0) target = $region33
    $region32: #{cnn_text_forward.1} parent=1 // pred_region
      %54 = dma.done [#allocation3], 256
    $region33: #{cnn_text_forward.1} parent=1 // pred_fallthru
      _
    // Predicated region
    $region34: #{cnn_text_forward.1} parent=1 // pred_check
      _
    $region35: #{cnn_text_forward.1} parent=1 // pred_check_branch
      %56 = sbr.rel (0) target = $region37
    $region36: #{cnn_text_forward.1} parent=1 // pred_region
      %58 = dma.done [#allocation6], 1024
    $region37: #{cnn_text_forward.1} parent=1 // pred_fallthru
      _
    %v60 = vld [vmem:[%s0] sm:$0xf]
    %v61 = vld [vmem:[%s0 + $0x4] sm:$0xf]
    %v62 = vld [vmem:[%s0 + $0x8] sm:$0xf]
    %v63 = vld [vmem:[%s0 + $0xc] sm:$0xf]
    %v64 = vld [vmem:[%s0 + $0x10] sm:$0xf]
    %v65 = vld [vmem:[%s0 + $0x14] sm:$0xf]
    %v66 = vld [vmem:[%s1] sm:$0xf]
    %v67 = vld [vmem:[%s1 + $0x4] sm:$0xf]
    %v68 = vld [vmem:[%s1 + $0x8] sm:$0xf]
    %v69 = vld [vmem:[%s1 + $0xc] sm:$0xf]
    %v70 = vld [vmem:[%s1 + $0x10] sm:$0xf]
    %v71 = vld [vmem:[%s1 + $0x14] sm:$0xf]
    %v72 = vld [vmem:[%s1 + $0x18] sm:$0xf]
    %v73 = vld [vmem:[%s1 + $0x1c] sm:$0xf]
    %v74 = vld [vmem:[%s1 + $0x20] sm:$0xf]
    %v75 = vld [vmem:[%s1 + $0x24] sm:$0xf]
    %v76 = vld [vmem:[%s1 + $0x28] sm:$0xf]
    %v77 = vld [vmem:[%s1 + $0x2c] sm:$0xf]
    %v78 = vld [vmem:[%s1 + $0x30] sm:$0xf]
    %v79 = vld [vmem:[%s1 + $0x34] sm:$0xf]
    %v80 = vld [vmem:[%s1 + $0x38] sm:$0xf]
    %v81 = vld [vmem:[%s1 + $0x3c] sm:$0xf]
    %v82 = vld [vmem:[%s1 + $0x40] sm:$0xf]
    %v83 = vld [vmem:[%s1 + $0x44] sm:$0xf]
    %v84 = vld [vmem:[%s1 + $0x48] sm:$0xf]
    %v85 = vld [vmem:[%s1 + $0x4c] sm:$0xf]
    %vm86 = vsmask.f32 3328
    %vm87 = vsmask.f32 7440
    %vm88 = vmor %vm86, %vm87
    %v90 = vshrl.u32 %v60, 16
    %v92 = vrot.slane %v90, 4
    %v93 = vshll.u32 %v60, 16
    %v95 = vrot.slane %v93, 5
    %v96 = vor.u32 %v92, %v95
    %v97 = vrot.slane %v96, 4
    %v99 = vshll.u32 %v61, 16
    %v101 = vrot.slane %v99, 5
    %v102 = vsel %vm88, %v97, %v101
    %v103 = vshrl.u32 %v61, 16
    %v105 = vrot.slane %v103, 4
    %v106 = vor.u32 %v105, %v101
    %v107 = vrot.slane %v106, 4
    %v109 = vshll.u32 %v62, 16
    %v111 = vrot.slane %v109, 5
    %v112 = vsel %vm88, %v107, %v111
    %v114 = vshrl.u32 %v63, 16
    %v116 = vrot.slane %v114, 4
    %v117 = vshll.u32 %v63, 16
    %v119 = vrot.slane %v117, 5
    %v120 = vor.u32 %v116, %v119
    %v121 = vrot.slane %v120, 4
    %v123 = vshll.u32 %v64, 16
    %v125 = vrot.slane %v123, 5
    %v126 = vsel %vm88, %v121, %v125
    %v127 = vshrl.u32 %v64, 16
    %v129 = vrot.slane %v127, 4
    %v130 = vor.u32 %v129, %v125
    %v131 = vrot.slane %v130, 4
    %v133 = vshll.u32 %v65, 16
    %v135 = vrot.slane %v133, 5
    %v136 = vsel %vm88, %v131, %v135
    %v137 = vunpack.c.l.b16 %v102
    %v138 = vunpack.c.l.b16 %v112
    %v139 = vunpack.c.l.b16 %v126
    %v140 = vunpack.c.l.b16 %v136
    %v141 = vpack.c.b16 %v138, %v137
    %v142 = vpack.c.b16 %v140, %v139
    %v147 = vunpack.c.l.b16 %v70
    %v148 = vunpack.c.l.b16 %v71
    %v149 = vunpack.c.l.b16 %v72
    %v150 = vunpack.c.l.b16 %v73
    %v151 = vpack.c.b16 %v148, %v147
    %v152 = vpack.c.b16 %v150, %v149
    %vm155 = vcmask 261120
    %v157 = vsel %vm155, %v141, 0
    %v160 = vsel %vm155, %v142, 0
    %162 = vmatpush.bf16.msra.mxu0 0
    %163 = vmatpush.bf16.msra.mxu0 0
    %164 = vmatpush.bf16.msra.mxu0 0
    %165 = vmatpush.bf16.msra.mxu0 0
    %166 = vmatpush.bf16.msra.mxu0 0
    %167 = vmatpush.bf16.msra.mxu0 0
    %168 = vmatpush.bf16.msra.mxu0 %v152
    %169 = vmatpush.bf16.msra.mxu0 %v151
    %170 = vmatmul.bf16.gmra.mxu0 %v157
    %v171 = vpop.f32.mrf.mxu0
    %v172 = vadd.f32 0.0, %v171
    %v173 = vpop.f32.mrf.mxu0
    %v174 = vadd.f32 0.0, %v173
    %175 = vmatmul.bf16.gmra.mxu0 %v160
    %v176 = vpop.f32.mrf.mxu0
    %v177 = vadd.f32 0.0, %v176
    %v178 = vpop.f32.mrf.mxu0
    %v179 = vadd.f32 0.0, %v178
    %180 = vdwg.mxu0
    %v185 = vunpack.c.l.b16 %v60
    %v186 = vunpack.c.l.b16 %v61
    %v187 = vunpack.c.l.b16 %v63
    %v188 = vunpack.c.l.b16 %v64
    %v189 = vpack.c.b16 %v186, %v185
    %v190 = vpack.c.b16 %v188, %v187
    %v195 = vunpack.c.l.b16 %v66
    %v196 = vunpack.c.l.b16 %v67
    %v197 = vunpack.c.l.b16 %v68
    %v198 = vunpack.c.l.b16 %v69
    %v199 = vpack.c.b16 %v196, %v195
    %v200 = vpack.c.b16 %v198, %v197
    %v204 = vsel %vm155, %v189, 0
    %v207 = vsel %vm155, %v190, 0
    %209 = vmatpush.bf16.msra.mxu0 0
    %210 = vmatpush.bf16.msra.mxu0 0
    %211 = vmatpush.bf16.msra.mxu0 0
    %212 = vmatpush.bf16.msra.mxu0 0
    %213 = vmatpush.bf16.msra.mxu0 0
    %214 = vmatpush.bf16.msra.mxu0 0
    %215 = vmatpush.bf16.msra.mxu0 %v200
    %216 = vmatpush.bf16.msra.mxu0 %v199
    %217 = vmatmul.bf16.gmra.mxu0 %v204
    %v218 = vpop.f32.mrf.mxu0
    %v219 = vadd.f32 %v172, %v218
    %v220 = vpop.f32.mrf.mxu0
    %v221 = vadd.f32 %v174, %v220
    %222 = vmatmul.bf16.gmra.mxu0 %v207
    %v223 = vpop.f32.mrf.mxu0
    %v224 = vadd.f32 %v177, %v223
    %v225 = vpop.f32.mrf.mxu0
    %v226 = vadd.f32 %v179, %v225
    %227 = vdwg.mxu0
    %vm230 = vcmask 1042432
    %vm231 = vcmask 1046532
    %vm232 = vmor %vm230, %vm231
    %v233 = vrot.slane %v60, 5
    %v234 = vrot.slane %v233, 4
    %v235 = vrot.slane %v61, 5
    %v236 = vsel %vm232, %v234, %v235
    %v237 = vrot.slane %v235, 4
    %v238 = vrot.slane %v62, 5
    %v239 = vsel %vm232, %v237, %v238
    %v240 = vrot.slane %v63, 5
    %v241 = vrot.slane %v240, 4
    %v242 = vrot.slane %v64, 5
    %v243 = vsel %vm232, %v241, %v242
    %v244 = vrot.slane %v242, 4
    %v245 = vrot.slane %v65, 5
    %v246 = vsel %vm232, %v244, %v245
    %v247 = vunpack.c.l.b16 %v236
    %v248 = vunpack.c.l.b16 %v239
    %v249 = vunpack.c.l.b16 %v243
    %v250 = vunpack.c.l.b16 %v246
    %v251 = vpack.c.b16 %v248, %v247
    %v252 = vpack.c.b16 %v250, %v249
    %v257 = vunpack.c.l.b16 %v74
    %v258 = vunpack.c.l.b16 %v75
    %v259 = vunpack.c.l.b16 %v76
    %v260 = vunpack.c.l.b16 %v77
    %v261 = vpack.c.b16 %v258, %v257
    %v262 = vpack.c.b16 %v260, %v259
    %v266 = vsel %vm155, %v251, 0
    %v269 = vsel %vm155, %v252, 0
    %271 = vmatpush.bf16.msra.mxu0 0
    %272 = vmatpush.bf16.msra.mxu0 0
    %273 = vmatpush.bf16.msra.mxu0 0
    %274 = vmatpush.bf16.msra.mxu0 0
    %275 = vmatpush.bf16.msra.mxu0 0
    %276 = vmatpush.bf16.msra.mxu0 0
    %277 = vmatpush.bf16.msra.mxu0 %v262
    %278 = vmatpush.bf16.msra.mxu0 %v261
    %279 = vmatmul.bf16.gmra.mxu0 %v266
    %v280 = vpop.f32.mrf.mxu0
    %v281 = vadd.f32 0.0, %v280
    %v282 = vpop.f32.mrf.mxu0
    %v283 = vadd.f32 0.0, %v282
    %284 = vmatmul.bf16.gmra.mxu0 %v269
    %v285 = vpop.f32.mrf.mxu0
    %v286 = vadd.f32 0.0, %v285
    %v287 = vpop.f32.mrf.mxu0
    %v288 = vadd.f32 0.0, %v287
    %289 = vdwg.mxu0
    %v290 = vadd.f32 %v219, %v281
    %v291 = vadd.f32 %v221, %v283
    %v292 = vadd.f32 %v224, %v286
    %v293 = vadd.f32 %v226, %v288
    %vm294 = vsmask.f32 2304
    %vm295 = vsmask.f32 6416
    %vm296 = vmor %vm294, %vm295
    %v297 = vrot.slane %v90, 5
    %v298 = vrot.slane %v93, 6
    %v299 = vor.u32 %v297, %v298
    %v300 = vrot.slane %v299, 4
    %v301 = vrot.slane %v103, 5
    %v302 = vrot.slane %v99, 6
    %v303 = vor.u32 %v301, %v302
    %v304 = vsel %vm296, %v300, %v303
    %v305 = vrot.slane %v303, 4
    %v306 = vshrl.u32 %v62, 16
    %v308 = vrot.slane %v306, 5
    %v309 = vrot.slane %v109, 6
    %v310 = vor.u32 %v308, %v309
    %v311 = vsel %vm296, %v305, %v310
    %v312 = vrot.slane %v114, 5
    %v313 = vrot.slane %v117, 6
    %v314 = vor.u32 %v312, %v313
    %v315 = vrot.slane %v314, 4
    %v316 = vrot.slane %v127, 5
    %v317 = vrot.slane %v123, 6
    %v318 = vor.u32 %v316, %v317
    %v319 = vsel %vm296, %v315, %v318
    %v320 = vrot.slane %v318, 4
    %v321 = vshrl.u32 %v65, 16
    %v323 = vrot.slane %v321, 5
    %v324 = vrot.slane %v133, 6
    %v325 = vor.u32 %v323, %v324
    %v326 = vsel %vm296, %v320, %v325
    %v327 = vunpack.c.l.b16 %v304
    %v328 = vunpack.c.l.b16 %v311
    %v329 = vunpack.c.l.b16 %v319
    %v330 = vunpack.c.l.b16 %v326
    %v331 = vpack.c.b16 %v328, %v327
    %v332 = vpack.c.b16 %v330, %v329
    %v337 = vunpack.c.l.b16 %v78
    %v338 = vunpack.c.l.b16 %v79
    %v339 = vunpack.c.l.b16 %v80
    %v340 = vunpack.c.l.b16 %v81
    %v341 = vpack.c.b16 %v338, %v337
    %v342 = vpack.c.b16 %v340, %v339
    %v346 = vsel %vm155, %v331, 0
    %v349 = vsel %vm155, %v332, 0
    %351 = vmatpush.bf16.msra.mxu0 0
    %352 = vmatpush.bf16.msra.mxu0 0
    %353 = vmatpush.bf16.msra.mxu0 0
    %354 = vmatpush.bf16.msra.mxu0 0
    %355 = vmatpush.bf16.msra.mxu0 0
    %356 = vmatpush.bf16.msra.mxu0 0
    %357 = vmatpush.bf16.msra.mxu0 %v342
    %358 = vmatpush.bf16.msra.mxu0 %v341
    %359 = vmatmul.bf16.gmra.mxu0 %v346
    %v360 = vpop.f32.mrf.mxu0
    %v361 = vadd.f32 0.0, %v360
    %v362 = vpop.f32.mrf.mxu0
    %v363 = vadd.f32 0.0, %v362
    %364 = vmatmul.bf16.gmra.mxu0 %v349
    %v365 = vpop.f32.mrf.mxu0
    %v366 = vadd.f32 0.0, %v365
    %v367 = vpop.f32.mrf.mxu0
    %v368 = vadd.f32 0.0, %v367
    %369 = vdwg.mxu0
    %v370 = vadd.f32 %v290, %v361
    %v371 = vadd.f32 %v291, %v363
    %v372 = vadd.f32 %v292, %v366
    %v373 = vadd.f32 %v293, %v368
    %vm374 = vcmask 1041408
    %vm375 = vcmask 1045508
    %vm376 = vmor %vm374, %vm375
    %v377 = vrot.slane %v60, 6
    %v378 = vrot.slane %v377, 4
    %v379 = vrot.slane %v61, 6
    %v380 = vsel %vm376, %v378, %v379
    %v381 = vrot.slane %v379, 4
    %v382 = vrot.slane %v62, 6
    %v383 = vsel %vm376, %v381, %v382
    %v384 = vrot.slane %v63, 6
    %v385 = vrot.slane %v384, 4
    %v386 = vrot.slane %v64, 6
    %v387 = vsel %vm376, %v385, %v386
    %v388 = vrot.slane %v386, 4
    %v389 = vrot.slane %v65, 6
    %v390 = vsel %vm376, %v388, %v389
    %v391 = vunpack.c.l.b16 %v380
    %v392 = vunpack.c.l.b16 %v383
    %v393 = vunpack.c.l.b16 %v387
    %v394 = vunpack.c.l.b16 %v390
    %v395 = vpack.c.b16 %v392, %v391
    %v396 = vpack.c.b16 %v394, %v393
    %v401 = vunpack.c.l.b16 %v82
    %v402 = vunpack.c.l.b16 %v83
    %v403 = vunpack.c.l.b16 %v84
    %v404 = vunpack.c.l.b16 %v85
    %v405 = vpack.c.b16 %v402, %v401
    %v406 = vpack.c.b16 %v404, %v403
    %v410 = vsel %vm155, %v395, 0
    %v413 = vsel %vm155, %v396, 0
    %415 = vmatpush.bf16.msra.mxu0 0
    %416 = vmatpush.bf16.msra.mxu0 0
    %417 = vmatpush.bf16.msra.mxu0 0
    %418 = vmatpush.bf16.msra.mxu0 0
    %419 = vmatpush.bf16.msra.mxu0 0
    %420 = vmatpush.bf16.msra.mxu0 0
    %421 = vmatpush.bf16.msra.mxu0 %v406
    %422 = vmatpush.bf16.msra.mxu0 %v405
    %423 = vmatmul.bf16.gmra.mxu0 %v410
    %v424 = vpop.f32.mrf.mxu0
    %v425 = vadd.f32 0.0, %v424
    %v426 = vpop.f32.mrf.mxu0
    %v427 = vadd.f32 0.0, %v426
    %428 = vmatmul.bf16.gmra.mxu0 %v413
    %v429 = vpop.f32.mrf.mxu0
    %v430 = vadd.f32 0.0, %v429
    %v431 = vpop.f32.mrf.mxu0
    %v432 = vadd.f32 0.0, %v431
    %433 = vdwg.mxu0
    %v434 = vadd.f32 %v370, %v425
    %v435 = vadd.f32 %v371, %v427
    %v436 = vadd.f32 %v372, %v430
    %v437 = vadd.f32 %v373, %v432
    %v438 = vld [vmem:[%s2] sm:$0x1]
    %v440 = vperm.slane %v438, 0
    %v442 = vadd.f32 %v434, %v440
    %v443 = vadd.f32 %v435, %v440
    %v444 = vadd.f32 %v436, %v440
    %v445 = vadd.f32 %v437, %v440
    %v446 = vmax.f32 %v442, 0.0
    %v447 = vmax.f32 %v443, 0.0
    %v448 = vmax.f32 %v444, 0.0
    %v449 = vmax.f32 %v445, 0.0
    %v450 = vld [vmem:[#allocation2] sm:$0xff]
    %v451 = vld [vmem:[#allocation2 + $0x8] sm:$0xff]
    %v452 = vmul.f32 %v446, %v450
    %v453 = vmul.f32 %v447, %v451
    %v454 = vmul.f32 %v448, %v450
    %v455 = vmul.f32 %v449, %v451
    %v456 = vmax.f32 %v452, %v453
    %v457 = vrot.slane %v456, 4
    %v458 = vmax.f32 %v456, %v457
    %v459 = vrot.slane %v458, 2
    %v460 = vmax.f32 %v458, %v459
    %v461 = vrot.slane %v460, 1
    %v462 = vmax.f32 %v460, %v461
    %v463 = vmax.f32 %v454, %v455
    %v464 = vrot.slane %v463, 4
    %v465 = vmax.f32 %v463, %v464
    %v466 = vrot.slane %v465, 2
    %v467 = vmax.f32 %v465, %v466
    %v468 = vrot.slane %v467, 1
    %v469 = vmax.f32 %v467, %v468
    %v470 = vpack.c.bf16 %v462, %v462
    %v471 = vpack.c.bf16 %v469, %v469
    %v472 = vld [vmem:[#allocation5] sm:$0xf]
    %v473 = vld [vmem:[#allocation5 + $0x4] sm:$0xf]
    %v474 = vld [vmem:[#allocation5 + $0x8] sm:$0xf]
    %v475 = vld [vmem:[#allocation5 + $0xc] sm:$0xf]
    %v476 = vld [vmem:[#allocation5 + $0x10] sm:$0xf]
    %v477 = vld [vmem:[#allocation5 + $0x14] sm:$0xf]
    %v478 = vld [vmem:[#allocation5 + $0x18] sm:$0xf]
    %v479 = vld [vmem:[#allocation5 + $0x1c] sm:$0xf]
    %v480 = vld [vmem:[#allocation5 + $0x20] sm:$0xf]
    %v481 = vld [vmem:[#allocation5 + $0x24] sm:$0xf]
    %v482 = vld [vmem:[#allocation5 + $0x28] sm:$0xf]
    %v483 = vld [vmem:[#allocation5 + $0x2c] sm:$0xf]
    %v484 = vld [vmem:[#allocation5 + $0x30] sm:$0xf]
    %v485 = vld [vmem:[#allocation5 + $0x34] sm:$0xf]
    %v486 = vld [vmem:[#allocation5 + $0x38] sm:$0xf]
    %v487 = vld [vmem:[#allocation5 + $0x3c] sm:$0xf]
    %v488 = vld [vmem:[%s5] sm:$0x1]
    %v490 = vperm.slane %v488, 0
    %v494 = vunpack.c.l.b16 %v470
    %v495 = vunpack.c.l.b16 %v471
    %vm496 = vcmask 1041409
    %v497 = vsel %vm496, %v495, %v494
    %v498 = vpack.c.b16 %v497, %v497
    %v516 = vunpack.c.l.b16 %v472
    %v517 = vunpack.c.l.b16 %v473
    %v518 = vunpack.c.l.b16 %v474
    %v519 = vunpack.c.l.b16 %v475
    %v520 = vunpack.c.l.b16 %v476
    %v521 = vunpack.c.l.b16 %v477
    %v522 = vunpack.c.l.b16 %v478
    %v523 = vunpack.c.l.b16 %v479
    %v524 = vunpack.c.l.b16 %v480
    %v525 = vunpack.c.l.b16 %v481
    %v526 = vunpack.c.l.b16 %v482
    %v527 = vunpack.c.l.b16 %v483
    %v528 = vunpack.c.l.b16 %v484
    %v529 = vunpack.c.l.b16 %v485
    %v530 = vunpack.c.l.b16 %v486
    %v531 = vunpack.c.l.b16 %v487
    %v532 = vpack.c.b16 %v517, %v516
    %v533 = vpack.c.b16 %v519, %v518
    %v534 = vpack.c.b16 %v521, %v520
    %v535 = vpack.c.b16 %v523, %v522
    %v536 = vpack.c.b16 %v525, %v524
    %v537 = vpack.c.b16 %v527, %v526
    %v538 = vpack.c.b16 %v529, %v528
    %v539 = vpack.c.b16 %v531, %v530
    %548 = vmatpush.bf16.msra.mxu0 %v539
    %549 = vmatpush.bf16.msra.mxu0 %v538
    %550 = vmatpush.bf16.msra.mxu0 %v537
    %551 = vmatpush.bf16.msra.mxu0 %v536
    %552 = vmatpush.bf16.msra.mxu0 %v535
    %553 = vmatpush.bf16.msra.mxu0 %v534
    %554 = vmatpush.bf16.msra.mxu0 %v533
    %555 = vmatpush.bf16.msra.mxu0 %v532
    %556 = vmatmul.bf16.gmra.mxu0 %v498
    %v557 = vpop.f32.mrf.mxu0
    %v558 = vadd.f32 %v490, %v557
    %v559 = vpop.f32.mrf.mxu0
    %560 = vdwg.mxu0
    %v561 = vmax.f32 %v558, 0.0
    %v562 = vld [vmem:[%s6] sm:$0x1]
    %v564 = vperm.slane %v562, 0
    %v566 = vadd.f32 %v561, %v564
    %vm567 = vcmask 1041408
    %v568 = vsel %vm567, %v566, -inf
    %569 = vmax.xlane.f32.xlu0 %v568
    %v570 = vpop.xlane.xlu0 %569
    %v571 = vsub.f32 %v566, %v570
    %v572 = vmul.f32 %v571, 1.442695
    %v573 = vpow.pop %v572
    %v574 = vsel %vm567, %v573, 0.0
    %575 = vadd.xlane.f32.xlu0 %v574
    %v576 = vpop.xlane.xlu0 %575
    %v577 = vrcp.pop %v576
    %v578 = vmul.f32 %v573, %v577
    %579 = vst [vmem:[#allocation7] sm:$0x3] %v578
    // Predicated region
    $region38: #{cnn_text_forward.1} parent=1 // pred_check
      _
    $region39: #{cnn_text_forward.1} parent=1 // pred_check_branch
      %581 = sbr.rel (0) target = $region41
    $region40: #{cnn_text_forward.1} parent=1 // pred_region
      %583 = vsyncadd [#allocation4], 0
      %s585 = sshll.u32 [#allocation7], 4
      %s586 = int_to_ptr.vmem [resolvable:$true] %s585
      %s587 = sshll.u32 %s7, 4
      %s588 = int_to_ptr.hbm [resolvable:$true] %s587
      %590 = dma.vmem_to_hbm [thread:$0]  %s586, 32, %s588, [#allocation4]
    $region41: #{cnn_text_forward.1} parent=1 // pred_fallthru
      _
    // Predicated region
    $region42: #{cnn_text_forward.1} parent=1 // pred_check
      _
    $region43: #{cnn_text_forward.1} parent=1 // pred_check_branch
      %592 = sbr.rel (0) target = $region45
    $region44: #{cnn_text_forward.1} parent=1 // pred_region
      %594 = dma.done [#allocation4], 32
    $region45: #{cnn_text_forward.1} parent=1 // pred_fallthru
      _
    %595 = vsyncpa [#allocation3], 1
    %596 = vsyncpa [#allocation6], 1
    %597 = vsyncpa [#allocation4], 1

</llo_original>
